<compile_context>
chip_gen: v7x
topology: tpu7x:2x2x1
jax: 0.10.0
libtpu: 0.0.40
codegen_flags: <defaults>
</compile_context>

<pallas_src>
import functools

import jax
import jax.numpy as jnp
from jax.experimental import pallas as pl
from jax.experimental.pallas import tpu as pltpu


def _cosine_loss_kernel(x_ref, t_ref, out_ref, acc_cos_ref, acc_ce_ref, *,
                        xent, n_rows):
    step = pl.program_id(0)
    tn, c = x_ref.shape

    @pl.when(step == 0)
    def _init():
        acc_cos_ref[...] = jnp.zeros_like(acc_cos_ref)
        acc_ce_ref[...] = jnp.zeros_like(acc_ce_ref)

    x = x_ref[...].astype(jnp.float32)                       # (TN, C)
    t = t_ref[...]                                           # (TN, 1) int32

    # Row-validity mask so a padded partial last tile never pollutes the sums.
    row = jax.lax.broadcasted_iota(jnp.int32, (tn, 1), 0) + step * tn
    valid = row < n_rows                                     # (TN, 1) bool

    # One-hot gather of x[i, t_i] via lane iota + masked lane-reduce
    # (no dynamic gather on TPU; an MXU formulation would be slower here).
    col = jax.lax.broadcasted_iota(jnp.int32, (tn, c), 1)
    onehot = (col == t).astype(jnp.float32)                  # (TN, C)
    x_t = jnp.sum(x * onehot, axis=1, keepdims=True)         # (TN, 1)

    # Per-row squared L2 norm; two eps-clamped inverse norms.
    # rsqrt(max(sumsq, eps^2)) == 1 / max(||x||, eps) -> avoids an (TN,C) divide.
    sumsq = jnp.sum(x * x, axis=1, keepdims=True)            # (TN, 1)
    inv8 = jax.lax.rsqrt(jnp.maximum(sumsq, 1e-16))          # 1/max(||x||, 1e-8)
    inv12 = jax.lax.rsqrt(jnp.maximum(sumsq, 1e-24))         # 1/max(||x||, 1e-12)

    # cosine_embedding_loss with y = 1; ||onehot|| == 1.
    cos_term = 1.0 - x_t * inv8                              # (TN, 1)

    # cross_entropy(F.normalize(x), t).  |xn| <= 1 so logsumexp needs no
    # max-stabilizer (saves an (TN, C) lane max-reduce + subtract).
    xn = x * inv12                                           # (TN, C)
    lse = jnp.log(jnp.sum(jnp.exp(xn), axis=1, keepdims=True))  # (TN, 1)
    ce_term = lse - x_t * inv12                              # (TN, 1)

    zero = jnp.zeros_like(cos_term)
    acc_cos_ref[...] += jnp.sum(jnp.where(valid, cos_term, zero),
                                axis=0, keepdims=True)
    acc_ce_ref[...] += jnp.sum(jnp.where(valid, ce_term, zero),
                               axis=0, keepdims=True)

    @pl.when(step == pl.num_programs(0) - 1)
    def _finalize():
        inv_n = 1.0 / n_rows
        out_ref[...] = (acc_cos_ref[...] + xent * acc_ce_ref[...]) * inv_n


def cosine_loss(x, target, xent=0.1, block_rows=256):
    """x: (N, C) float; target: (N,) int. Returns scalar f32 (reduction='mean')."""
    n, c = x.shape
    t2 = target.reshape(n, 1).astype(jnp.int32)

    # Row tile: whole batch if it is small, otherwise a multiple-of-8 row block
    # (last partial tile is masked inside the kernel).  block_rows=256 keeps
    # 2 buffers x TN x C f32 comfortably inside v7x's 64 MiB VMEM for C <= ~8k.
    # TODO(synk): for vocab-scale C (>= 32k classes) add an inner C-tiled grid
    # axis with streaming sumsq / online-logsumexp accumulators.
    if n <= block_rows:
        tn = n
    else:
        tn = max(8, (block_rows // 8) * 8)
    grid = (pl.cdiv(n, tn),)

    itemsize = jnp.dtype(x.dtype).itemsize
    cost = pl.CostEstimate(
        flops=8 * n * c,
        transcendentals=n * c + 3 * n,       # exp per element; rsqrt/log per row
        bytes_accessed=n * c * itemsize + n * 4 + 4,
    )

    out = pl.pallas_call(
        functools.partial(_cosine_loss_kernel, xent=xent, n_rows=n),
        out_shape=jax.ShapeDtypeStruct((1, 1), jnp.float32),
        grid=grid,
        in_specs=[
            pl.BlockSpec((tn, c), lambda i: (i, 0)),
            pl.BlockSpec((tn, 1), lambda i: (i, 0)),
        ],
        # Accumulator-style output: same block every step, written once at the end.
        out_specs=pl.BlockSpec((1, 1), lambda i: (0, 0)),
        scratch_shapes=[
            pltpu.VMEM((1, 1), jnp.float32),   # running sum of cosine terms
            pltpu.VMEM((1, 1), jnp.float32),   # running sum of CE terms
        ],
        compiler_params=pltpu.CompilerParams(
            dimension_semantics=("arbitrary",)),
        cost_estimate=cost,
    )(x, t2)
    return out[0, 0]


def _reference(x, target, xent=0.1):
    # Pure-JAX reference of the PyTorch forward.
    x = x.astype(jnp.float32)
    n, c = x.shape
    norm = jnp.linalg.norm(x, axis=1, keepdims=True)
    x_t = jnp.take_along_axis(x, target.reshape(n, 1), axis=1)
    cos_loss = jnp.mean(1.0 - x_t / jnp.maximum(norm, 1e-8))
    xn = x / jnp.maximum(norm, 1e-12)
    logp = jax.nn.log_softmax(xn, axis=1)
    ce = -jnp.mean(jnp.take_along_axis(logp, target.reshape(n, 1), axis=1))
    return cos_loss + xent * ce


if __name__ == "__main__":
    key = jax.random.PRNGKey(0)
    kx, kt = jax.random.split(key)

    # Small case: single tile (grid = 1).
    N, C = 8, 128
    x = jax.random.normal(kx, (N, C), dtype=jnp.float32)
    target = jax.random.randint(kt, (N,), 0, C, dtype=jnp.int32)
    out = cosine_loss(x, target, xent=0.1)
    jax.block_until_ready(out)
    ref = _reference(x, target, xent=0.1)
    assert jnp.allclose(out, ref, atol=1e-5, rtol=1e-5), (out, ref)

    # Tiled case with a partial last tile (exercises accumulator + masking path).
    kx2, kt2 = jax.random.split(jax.random.PRNGKey(1))
    N2, C2 = 40, 128
    x2 = jax.random.normal(kx2, (N2, C2), dtype=jnp.float32)
    t2 = jax.random.randint(kt2, (N2,), 0, C2, dtype=jnp.int32)
    out2 = cosine_loss(x2, t2, xent=0.1, block_rows=16)
    jax.block_until_ready(out2)
    ref2 = _reference(x2, t2, xent=0.1)
    assert jnp.allclose(out2, ref2, atol=1e-5, rtol=1e-5), (out2, ref2)

    print("KERNEL_OK")
</pallas_src>

<mosaic_0001>
module attributes {stable_mosaic.version = 11 : i64} {
  func.func @_cosine_loss_kernel(%arg0: i32, %arg1: memref<8x128xf32, #tpu.memory_space<vmem>>, %arg2: memref<8x1xi32, #tpu.memory_space<vmem>>, %arg3: memref<1x1xf32, #tpu.memory_space<vmem>>, %arg4: memref<1x1xf32, #tpu.memory_space<vmem>>, %arg5: memref<1x1xf32, #tpu.memory_space<vmem>>) attributes {dimension_semantics = [#tpu.dimension_semantics<arbitrary>], iteration_bounds = array<i64: 1>, scalar_prefetch = 0 : i64, scratch_operands = 2 : i64, tpu.core_type = #tpu.core_type<tc>, window_params = [{transform_indices = @transform_0, window_bounds = array<i64: 8, 128>}, {transform_indices = @transform_1, window_bounds = array<i64: 8, 1>}, {pipeline_mode = #tpu.pipeline_mode<synchronous>, transform_indices = @transform_2, window_bounds = array<i64: 1, 1>}]} {
    %c0_i32 = arith.constant 0 : i32
    %0 = arith.cmpi eq, %arg0, %c0_i32 : i32
    %1 = arith.extui %0 : i1 to i32
    %c0_i32_0 = arith.constant 0 : i32
    %2 = arith.cmpi ne, %1, %c0_i32_0 : i32
    scf.if %2 {
      %cst_23 = arith.constant 0.000000e+00 : f32
      %55 = vector.broadcast %cst_23 : f32 to vector<1x1xf32>
      %c0_24 = arith.constant 0 : index
      %c0_25 = arith.constant 0 : index
      %56 = vector.load %arg4[%c0_24, %c0_25] : memref<1x1xf32, #tpu.memory_space<vmem>>, vector<1x1xf32>
      tpu.vector_store %arg4[%c0_24, %c0_25], %55 {strides = array<i32>} : memref<1x1xf32, #tpu.memory_space<vmem>>, vector<1x1xf32>,
      %cst_26 = arith.constant 0.000000e+00 : f32
      %57 = vector.broadcast %cst_26 : f32 to vector<1x1xf32>
      %c0_27 = arith.constant 0 : index
      %c0_28 = arith.constant 0 : index
      %58 = vector.load %arg5[%c0_27, %c0_28] : memref<1x1xf32, #tpu.memory_space<vmem>>, vector<1x1xf32>
      tpu.vector_store %arg5[%c0_27, %c0_28], %57 {strides = array<i32>} : memref<1x1xf32, #tpu.memory_space<vmem>>, vector<1x1xf32>,
    } else {
    }
    %c0 = arith.constant 0 : index
    %c0_1 = arith.constant 0 : index
    %3 = vector.load %arg1[%c0, %c0_1] : memref<8x128xf32, #tpu.memory_space<vmem>>, vector<8x128xf32>
    %c0_2 = arith.constant 0 : index
    %c0_3 = arith.constant 0 : index
    %4 = vector.load %arg2[%c0_2, %c0_3] : memref<8x1xi32, #tpu.memory_space<vmem>>, vector<8x1xi32>
    %5 = tpu.iota {dimensions = array<i32: 0>} : vector<8x1xi32>
    %c8_i32 = arith.constant 8 : i32
    %6 = arith.muli %arg0, %c8_i32 : i32
    %7 = vector.broadcast %6 : i32 to vector<8x1xi32>
    %8 = arith.addi %5, %7 : vector<8x1xi32>
    %c8_i32_4 = arith.constant 8 : i32
    %9 = vector.broadcast %c8_i32_4 : i32 to vector<8x1xi32>
    %10 = arith.cmpi slt, %8, %9 : vector<8x1xi32>
    %11 = tpu.iota {dimensions = array<i32: 1>} : vector<8x128xi32>
    %12 = vector.broadcast %4 : vector<8x1xi32> to vector<8x128xi32>
    %13 = arith.cmpi eq, %11, %12 : vector<8x128xi32>
    %14 = arith.extui %13 : vector<8x128xi1> to vector<8x128xi32>
    %15 = arith.sitofp %14 : vector<8x128xi32> to vector<8x128xf32>
    %16 = arith.mulf %3, %15 : vector<8x128xf32>
    %cst = arith.constant dense<0.000000e+00> : vector<8xf32>
    %17 = vector.multi_reduction <add>, %16, %cst [1] : vector<8x128xf32> to vector<8xf32>
    %18 = vector.shape_cast %17 : vector<8xf32> to vector<8x1xf32>
    %19 = arith.mulf %3, %3 : vector<8x128xf32>
    %cst_5 = arith.constant dense<0.000000e+00> : vector<8xf32>
    %20 = vector.multi_reduction <add>, %19, %cst_5 [1] : vector<8x128xf32> to vector<8xf32>
    %21 = vector.shape_cast %20 : vector<8xf32> to vector<8x1xf32>
    %cst_6 = arith.constant 1.000000e-16 : f32
    %22 = vector.broadcast %cst_6 : f32 to vector<8x1xf32>
    %23 = arith.maximumf %21, %22 : vector<8x1xf32>
    %24 = math.rsqrt %23 : vector<8x1xf32>
    %cst_7 = arith.constant 1.000000e-24 : f32
    %25 = vector.broadcast %cst_7 : f32 to vector<8x1xf32>
    %26 = arith.maximumf %21, %25 : vector<8x1xf32>
    %27 = math.rsqrt %26 : vector<8x1xf32>
    %28 = arith.mulf %18, %24 : vector<8x1xf32>
    %cst_8 = arith.constant 1.000000e+00 : f32
    %29 = vector.broadcast %cst_8 : f32 to vector<8x1xf32>
    %30 = arith.subf %29, %28 : vector<8x1xf32>
    %31 = vector.broadcast %27 : vector<8x1xf32> to vector<8x128xf32>
    %32 = arith.mulf %3, %31 : vector<8x128xf32>
    %33 = math.exp %32 : vector<8x128xf32>
    %cst_9 = arith.constant dense<0.000000e+00> : vector<8xf32>
    %34 = vector.multi_reduction <add>, %33, %cst_9 [1] : vector<8x128xf32> to vector<8xf32>
    %35 = vector.shape_cast %34 : vector<8xf32> to vector<8x1xf32>
    %36 = math.log %35 : vector<8x1xf32>
    %37 = arith.mulf %18, %27 : vector<8x1xf32>
    %38 = arith.subf %36, %37 : vector<8x1xf32>
    %cst_10 = arith.constant 0.000000e+00 : f32
    %39 = vector.broadcast %cst_10 : f32 to vector<8x1xf32>
    %c0_11 = arith.constant 0 : index
    %c0_12 = arith.constant 0 : index
    %40 = vector.load %arg4[%c0_11, %c0_12] : memref<1x1xf32, #tpu.memory_space<vmem>>, vector<1x1xf32>
    %41 = arith.select %10, %30, %39 : vector<8x1xi1>, vector<8x1xf32>
    %cst_13 = arith.constant dense<0.000000e+00> : vector<1xf32>
    %42 = vector.multi_reduction <add>, %41, %cst_13 [0] : vector<8x1xf32> to vector<1xf32>
    %43 = vector.shape_cast %42 : vector<1xf32> to vector<1x1xf32>
    %44 = arith.addf %40, %43 : vector<1x1xf32>
    %c0_14 = arith.constant 0 : index
    %c0_15 = arith.constant 0 : index
    %45 = vector.load %arg4[%c0_14, %c0_15] : memref<1x1xf32, #tpu.memory_space<vmem>>, vector<1x1xf32>
    tpu.vector_store %arg4[%c0_14, %c0_15], %44 {strides = array<i32>} : memref<1x1xf32, #tpu.memory_space<vmem>>, vector<1x1xf32>,
    %c0_16 = arith.constant 0 : index
    %c0_17 = arith.constant 0 : index
    %46 = vector.load %arg5[%c0_16, %c0_17] : memref<1x1xf32, #tpu.memory_space<vmem>>, vector<1x1xf32>
    %47 = arith.select %10, %38, %39 : vector<8x1xi1>, vector<8x1xf32>
    %cst_18 = arith.constant dense<0.000000e+00> : vector<1xf32>
    %48 = vector.multi_reduction <add>, %47, %cst_18 [0] : vector<8x1xf32> to vector<1xf32>
    %49 = vector.shape_cast %48 : vector<1xf32> to vector<1x1xf32>
    %50 = arith.addf %46, %49 : vector<1x1xf32>
    %c0_19 = arith.constant 0 : index
    %c0_20 = arith.constant 0 : index
    %51 = vector.load %arg5[%c0_19, %c0_20] : memref<1x1xf32, #tpu.memory_space<vmem>>, vector<1x1xf32>
    tpu.vector_store %arg5[%c0_19, %c0_20], %50 {strides = array<i32>} : memref<1x1xf32, #tpu.memory_space<vmem>>, vector<1x1xf32>,
    %c0_i32_21 = arith.constant 0 : i32
    %52 = arith.cmpi eq, %arg0, %c0_i32_21 : i32
    %53 = arith.extui %52 : i1 to i32
    %c0_i32_22 = arith.constant 0 : i32
    %54 = arith.cmpi ne, %53, %c0_i32_22 : i32
    scf.if %54 {
      %c0_23 = arith.constant 0 : index
      %c0_24 = arith.constant 0 : index
      %55 = vector.load %arg4[%c0_23, %c0_24] : memref<1x1xf32, #tpu.memory_space<vmem>>, vector<1x1xf32>
      %c0_25 = arith.constant 0 : index
      %c0_26 = arith.constant 0 : index
      %56 = vector.load %arg5[%c0_25, %c0_26] : memref<1x1xf32, #tpu.memory_space<vmem>>, vector<1x1xf32>
      %cst_27 = arith.constant 1.000000e-01 : f32
      %57 = vector.broadcast %cst_27 : f32 to vector<1x1xf32>
      %58 = arith.mulf %57, %56 : vector<1x1xf32>
      %59 = arith.addf %55, %58 : vector<1x1xf32>
      %cst_28 = arith.constant 1.250000e-01 : f32
      %60 = vector.broadcast %cst_28 : f32 to vector<1x1xf32>
      %61 = arith.mulf %59, %60 : vector<1x1xf32>
      %c0_29 = arith.constant 0 : index
      %c0_30 = arith.constant 0 : index
      %62 = vector.load %arg3[%c0_29, %c0_30] : memref<1x1xf32, #tpu.memory_space<vmem>>, vector<1x1xf32>
      tpu.vector_store %arg3[%c0_29, %c0_30], %61 {strides = array<i32>} : memref<1x1xf32, #tpu.memory_space<vmem>>, vector<1x1xf32>,
    } else {
    }
    return
  }
  func.func @transform_0(%arg0: i32) -> (i32, i32) {
    %c0_i32 = arith.constant 0 : i32
    %c0_i32_0 = arith.constant 0 : i32
    return %arg0, %c0_i32 : i32, i32
  }
  func.func @transform_1(%arg0: i32) -> (i32, i32) {
    %c0_i32 = arith.constant 0 : i32
    %c0_i32_0 = arith.constant 0 : i32
    return %arg0, %c0_i32 : i32, i32
  }
  func.func @transform_2(%arg0: i32) -> (i32, i32) {
    %c0_i32 = arith.constant 0 : i32
    %c0_i32_0 = arith.constant 0 : i32
    %c0_i32_1 = arith.constant 0 : i32
    return %c0_i32, %c0_i32_0 : i32, i32
  }
}

</mosaic_0001>

<llo_original>
// kernel: tpu_custom_call.1
$region0: #{tpu_custom_call.1}
  #allocation0 [shape = 'u32[]', space=smem, size = 0x4, offset = 0x4, fixed_abs, tag = 'smem constant byte address 0x4 - core index']
  #allocation1 [shape = 'u32[144,128]{1,0:T(1,128)}', space=vmem, size = 0x12000, scoped, tag = 'internal scratch']
  #allocation2 [shape = 'f32[1,1]{1,0:T(1,128)}', space=vmem, size = 0x200, scoped, tag = 'scratch operand']
  #allocation3 [shape = 'f32[1,1]{1,0:T(1,128)}', space=vmem, size = 0x200, scoped, tag = 'scratch operand']
  %s0 = inlined_call_operand.vmem [shape: f32[8,128], index: 0, kind: input, shape index: {}]
  %s1 = inlined_call_operand.vmem [shape: s32[8,1], index: 1, kind: input, shape index: {}]
  %s2 = inlined_call_operand.hbm [shape: f32[1,1], index: 2, kind: output, shape index: {}]
  %s3 = sld [smem:[#allocation0]]
  $region26: #{tpu_custom_call.1} parent=0
    _
  %s5 = ssub.s32 1, %s3
  %s6 = scalar_select 0, %s5, %s3
  $region1: #{tpu_custom_call.1} parent=0
    #allocation4 [shape = 'u8[512]{0}', space=vmem, size = 0x400, scoped, tag = 'output window, operand 0, single buffered']
    #allocation5 [shape = 's32[1]{0}', space=sflag, size = 0x4, scoped, tag = 'scoped memory for tpu_custom_call.1']
    %7 = vsyncpa [#allocation5], 0
    // Predicated region
    $region2: #{tpu_custom_call.1} parent=1 // pred_check
      _
    $region3: #{tpu_custom_call.1} parent=1 // pred_check_branch
      %9 = sbr.rel (0) target = $region5
    $region4: #{tpu_custom_call.1} parent=1 // pred_region
      _
    $region5: #{tpu_custom_call.1} parent=1 // pred_fallthru
      _
    // Predicated region
    $region6: #{tpu_custom_call.1} parent=1 // pred_check
      _
    $region7: #{tpu_custom_call.1} parent=1 // pred_check_branch
      %11 = sbr.rel (0) target = $region9
    $region8: #{tpu_custom_call.1} parent=1 // pred_region
      _
    $region9: #{tpu_custom_call.1} parent=1 // pred_fallthru
      _
    %p12 = scmp.eq.s32.totalorder 0, 0
    // Predicated region
    $region10: #{tpu_custom_call.1} parent=1 // pred_check
      %p13 = pneg %p12
    $region11: #{tpu_custom_call.1} parent=1 // pred_check_branch
      %15 = sbr.rel (%p13) target = $region13
    $region12: #{tpu_custom_call.1} parent=1 // pred_region
      %vm16 = vcmask 0
      %17 = vst.msk [vmem:[#allocation2] sm:$0x1] %vm16, 0.0
      %18 = vst.msk [vmem:[#allocation3] sm:$0x1] %vm16, 0.0
    $region13: #{tpu_custom_call.1} parent=1 // pred_fallthru
      _
    %v19 = vld [vmem:[%s0] sm:$0xff]
    %v20 = vld [vmem:[%s1] sm:$0xff]
    %v21 = vlaneseq
    %v22 = vshrl.u32 %v21, 7
    %s23 = smul.u32 0, 8
    %v24 = vstv %s23
    %v25 = vadd.s32 %v22, %v24
    %vm26 = vcmp.lt.s32.totalorder %v25, 8
    %v27 = vlaneseq
    %v28 = vand.u32 %v27, 127
    %29 = vset.pattern.permute.xlu0 0
    %30 = vperm.xlu0 %29, %v20
    %v31 = vpop.permute.xlu0 %30
    %vm32 = vcmp.eq.s32.totalorder %v28, %v31
    %v33 = vsel %vm32, 1, 0
    %v34 = vcvt.s32.f32 %v33
    %v35 = vmul.f32 %v19, %v34
    %36 = vadd.xlane.f32.xlu0 %v35
    %v37 = vpop.xlane.xlu0 %36
    %v38 = vmul.f32 %v19, %v19
    %39 = vadd.xlane.f32.xlu0 %v38
    %v40 = vpop.xlane.xlu0 %39
    %v41 = vmax.f32 %v40, 1e-16
    %v42 = vrsqrt.pop %v41
    %v43 = vmax.f32 %v40, 1e-24
    %v44 = vrsqrt.pop %v43
    %v45 = vmul.f32 %v37, %v42
    %v46 = vsub.f32 1.0, %v45
    %v47 = vmul.f32 %v19, %v44
    %v48 = vmul.f32 %v47, 1.442695
    %v49 = vpow.pop %v48
    %50 = vadd.xlane.f32.xlu0 %v49
    %v51 = vpop.xlane.xlu0 %50
    %v52 = vlog2.pop %v51
    %v53 = vmul.f32 %v52, 0.6931472
    %v54 = vmul.f32 %v37, %v44
    %v55 = vsub.f32 %v53, %v54
    %v56 = vld [vmem:[#allocation2] sm:$0x1]
    %v57 = vsel %vm26, %v46, 0.0
    %v58 = vrot.slane %v57, 4
    %v59 = vadd.f32 %v57, %v58
    %v60 = vrot.slane %v59, 2
    %v61 = vadd.f32 %v59, %v60
    %v62 = vrot.slane %v61, 1
    %v63 = vadd.f32 %v61, %v62
    %v64 = vadd.f32 %v56, %v63
    %vm65 = vcmask 0
    %66 = vst.msk [vmem:[#allocation2] sm:$0x1] %vm65, %v64
    %v67 = vld [vmem:[#allocation3] sm:$0x1]
    %v68 = vsel %vm26, %v55, 0.0
    %v69 = vrot.slane %v68, 4
    %v70 = vadd.f32 %v68, %v69
    %v71 = vrot.slane %v70, 2
    %v72 = vadd.f32 %v70, %v71
    %v73 = vrot.slane %v72, 1
    %v74 = vadd.f32 %v72, %v73
    %v75 = vadd.f32 %v67, %v74
    %76 = vst.msk [vmem:[#allocation3] sm:$0x1] %vm65, %v75
    // Predicated region
    $region14: #{tpu_custom_call.1} parent=1 // pred_check
      %p77 = pneg %p12
    $region15: #{tpu_custom_call.1} parent=1 // pred_check_branch
      %79 = sbr.rel (%p77) target = $region17
    $region16: #{tpu_custom_call.1} parent=1 // pred_region
      %v80 = vld [vmem:[#allocation2] sm:$0x1]
      %v81 = vld [vmem:[#allocation3] sm:$0x1]
      %v82 = vmul.f32 %v81, 0.1
      %v83 = vadd.f32 %v80, %v82
      %v84 = vmul.f32 %v83, 0.125
      %85 = vst.msk [vmem:[#allocation4] sm:$0x1] %vm65, %v84
    $region17: #{tpu_custom_call.1} parent=1 // pred_fallthru
      _
    // Predicated region
    $region18: #{tpu_custom_call.1} parent=1 // pred_check
      _
    $region19: #{tpu_custom_call.1} parent=1 // pred_check_branch
      %87 = sbr.rel (0) target = $region21
    $region20: #{tpu_custom_call.1} parent=1 // pred_region
      %s89 = ssub.s32 16, 16
      %90 = vsyncadd [#allocation5], %s89
      %s92 = sshll.u32 [#allocation4], 4
      %s93 = int_to_ptr.vmem [resolvable:$true] %s92
      %95 = dma.vmem_to_hbm [thread:$0]  %s93, 16, %s2, [#allocation5]
    $region21: #{tpu_custom_call.1} parent=1 // pred_fallthru
      _
    // Predicated region
    $region22: #{tpu_custom_call.1} parent=1 // pred_check
      _
    $region23: #{tpu_custom_call.1} parent=1 // pred_check_branch
      %97 = sbr.rel (0) target = $region25
    $region24: #{tpu_custom_call.1} parent=1 // pred_region
      %98 = dma.done [#allocation5], 16
    $region25: #{tpu_custom_call.1} parent=1 // pred_fallthru
      _
    %99 = vsyncpa [#allocation5], 1

</llo_original>
